<compile_context>
chip_gen: v6e
topology: v6e:2x2x1
jax: 0.10.0
libtpu: 0.0.40
codegen_flags: <defaults>
</compile_context>

<pallas_src>
import jax
import jax.numpy as jnp
import numpy as np
from jax.experimental import pallas as pl
from jax.experimental.pallas import tpu as pltpu


def _round_up(x, m):
    return (x + m - 1) // m * m


def _gcn_block_spmm_kernel(row_starts_ref, cols_ref, tile_ids_ref,
                           a_hbm, xw_ref, o_ref, a_buf, sem):
    """One grid step = one output row tile; loops over its nonzero A blocks."""
    del tile_ids_ref  # only consumed by the output index_map
    i = pl.program_id(0)
    start = row_starts_ref[i]
    cnt = row_starts_ref[i + 1] - start
    tk = a_buf.shape[2]

    # Zero-init; row tiles with no nonzero adjacency blocks stay zero
    # (bias is added outside the kernel).
    o_ref[...] = jnp.zeros_like(o_ref)

    def issue(slot, entry):
        pltpu.make_async_copy(a_hbm.at[entry], a_buf.at[slot],
                              sem.at[slot]).start()

    @pl.when(cnt > 0)
    def _():
        issue(0, start)

        @pl.loop(0, cnt)
        def _(s):
            slot = s & 1
            pltpu.make_async_copy(a_hbm.at[start], a_buf.at[slot],
                                  sem.at[slot]).wait()

            @pl.when(s + 1 < cnt)
            def _():
                issue(1 - slot, start + s + 1)

            koff = pl.multiple_of(cols_ref[start + s] * tk, tk)
            o_ref[...] += jnp.dot(a_buf[slot], xw_ref[pl.ds(koff, tk), :],
                                  preferred_element_type=jnp.float32)


def _build_block_csr(src, dst, norm, num_nodes, tm, tk, a_dtype):
    """Host-side glue: edge list -> block-CSR metadata + packed A blocks.

    Never densifies the N x N adjacency; work/memory scale with the number of
    edges and nonzero (tm, tk) blocks.  Meant to run outside jit (the grid
    size is data dependent); for a jitted path pass the metadata in directly.
    """
    src = np.asarray(jax.device_get(src)).astype(np.int64)
    dst = np.asarray(jax.device_get(dst)).astype(np.int64)
    nI = _round_up(num_nodes, tm) // tm
    nK = _round_up(num_nodes, tk) // tk

    bi = dst // tm
    bk = src // tk
    blk_key = bi * nK + bk
    uniq, edge_to_uniq = np.unique(blk_key, return_inverse=True)
    num_entries = int(uniq.shape[0])
    ubi = (uniq // nK).astype(np.int64)
    ubk = (uniq % nK).astype(np.int64)

    # Balance row tiles across TensorCores (v7x megacore): sort row tiles by
    # descending nonzero-block count, round-robin into two halves so a
    # contiguous split of the "parallel" grid axis sees equal work.
    counts_per_tile = np.bincount(ubi, minlength=nI)
    order = np.argsort(-counts_per_tile, kind="stable")
    grid_tiles = np.concatenate([order[0::2], order[1::2]])  # grid pos -> tile
    tile_pos = np.empty(nI, dtype=np.int64)
    tile_pos[grid_tiles] = np.arange(nI)

    # Entries sorted by (grid position, col block) -> CSR over grid positions.
    entry_order = np.lexsort((ubk, tile_pos[ubi]))
    e_cols = ubk[entry_order].astype(np.int32)
    e_pos = tile_pos[ubi][entry_order]
    row_starts = np.zeros(nI + 1, dtype=np.int32)
    row_starts[1:] = np.cumsum(np.bincount(e_pos, minlength=nI))

    # Edge -> packed-entry slot, scatter-add edge norms into the block array.
    slot_of_uniq = np.empty(max(num_entries, 1), dtype=np.int64)
    slot_of_uniq[entry_order] = np.arange(num_entries)
    edge_slot = jnp.asarray(slot_of_uniq[edge_to_uniq], jnp.int32)

    n_pad = max(num_entries, 1)
    a_blocks = jnp.zeros((n_pad, tm, tk), jnp.float32)
    a_blocks = a_blocks.at[edge_slot,
                           jnp.asarray(dst % tm, jnp.int32),
                           jnp.asarray(src % tk, jnp.int32)].add(
        jnp.asarray(norm, jnp.float32))
    # NOTE: bf16 A loses precision for very high-degree nodes; pass
    # a_dtype=jnp.float32 if that matters (2x A-stream cost).
    a_blocks = a_blocks.astype(a_dtype)

    e_cols_pad = np.zeros(n_pad, dtype=np.int32)
    e_cols_pad[:num_entries] = e_cols

    return (jnp.asarray(row_starts), jnp.asarray(e_cols_pad),
            jnp.asarray(grid_tiles.astype(np.int32)), a_blocks,
            num_entries, nI, nK)


def sparse_gcn_conv(src, dst, norm, features, weight_t, bias, *,
                    tm=128, tk=128, lane_pad=128, a_dtype=jnp.bfloat16):
    """Fused GCN layer: scatter-sum of norm[e] * x[src] over edges, then linear.

    On v6e / v7x, tm=tk=256 fills the 256-wide MXU and halves grid steps —
    use it when the graph's sparsity granularity keeps blocks skippable.
    """
    N, F_in = features.shape
    F_out = weight_t.shape[1]

    # Small dense X @ W stays in plain JAX (reassociation: A @ (X @ W) + b).
    xw = features.astype(jnp.float32) @ weight_t.astype(jnp.float32)

    Nr = _round_up(N, tm)
    Nc = _round_up(N, tk)
    Fp = _round_up(max(F_out, lane_pad), lane_pad)

    (row_starts, e_cols, tile_ids, a_blocks,
     num_entries, nI, _nK) = _build_block_csr(src, dst, norm, N, tm, tk, a_dtype)

    # XW, zero-padded to lane-dense width and VMEM-resident for the whole kernel.
    xw_p = jnp.zeros((Nc, Fp), jnp.float32).at[:N, :F_out].set(xw).astype(a_dtype)

    # VMEM budget: resident XW (x2 buffering worst case) + output double buffer
    # + A double buffer + headroom.  Capped at 48 MiB so it also fits v7x's
    # 64 MiB VMEM alongside the 2-TC split.
    # TODO(synk): chunk the resident XW along Nc for graphs where Nc*Fp*2 > ~40 MiB.
    vmem_bytes = 2 * Nc * Fp * 2 + 2 * tm * Fp * 4 + 2 * tm * tk * 2 + (4 << 20)
    vmem_limit = int(min(max(vmem_bytes, 16 << 20), 48 << 20))

    itemsize = jnp.dtype(a_dtype).itemsize
    flops = 2 * num_entries * tm * tk * Fp
    bytes_accessed = (num_entries * tm * tk * itemsize   # A blocks, streamed once
                      + Nc * Fp * itemsize               # XW, resident (one DMA)
                      + Nr * Fp * 4)                     # f32 output slab

    out_padded = pl.pallas_call(
        _gcn_block_spmm_kernel,
        out_shape=jax.ShapeDtypeStruct((Nr, Fp), jnp.float32),
        grid_spec=pltpu.PrefetchScalarGridSpec(
            num_scalar_prefetch=3,
            grid=(nI,),
            in_specs=[
                pl.BlockSpec(memory_space=pl.ANY),                      # packed A blocks
                pl.BlockSpec((Nc, Fp), lambda i, rs, cs, ti: (0, 0)),   # resident XW
            ],
            out_specs=pl.BlockSpec((tm, Fp),
                                   lambda i, rs, cs, ti: (ti[i], 0)),
            scratch_shapes=[
                pltpu.VMEM((2, tm, tk), a_blocks.dtype),   # A double buffer
                pltpu.SemaphoreType.DMA((2,)),
            ],
        ),
        compiler_params=pltpu.CompilerParams(
            dimension_semantics=("parallel",),
            vmem_limit_bytes=vmem_limit,
        ),
        cost_estimate=pl.CostEstimate(flops=flops, transcendentals=0,
                                      bytes_accessed=bytes_accessed),
    )(row_starts, e_cols, tile_ids, a_blocks, xw_p)

    # Bias added on the un-padded slice (outside the kernel, per review).
    return out_padded[:N, :F_out] + bias[None, :].astype(jnp.float32)


if __name__ == "__main__":
    # ---- small, deterministic synthetic problem ------------------------------
    N = 512          # number of nodes
    E = 2048         # number of edges
    IN_FEATS = 32
    OUT_FEATS = 16
    BLOCK = 128

    key = jax.random.PRNGKey(0)
    (k_dst, k_off, k_norm, k_feat, k_w, k_b,
     k_xd, k_xs, k_xn) = jax.random.split(key, 9)

    # Blocky sparse connectivity: most (128, 128) adjacency blocks are all-zero
    # so the block-CSR path only materializes / streams the nonzero blocks.
    dst = jax.random.randint(k_dst, (E,), 0, N, dtype=jnp.int32)
    src = (dst // BLOCK) * BLOCK + jax.random.randint(
        k_off, (E,), 0, BLOCK, dtype=jnp.int32)
    norm = jax.random.uniform(k_norm, (E,), dtype=jnp.float32)

    # A few cross-block edges exercise multi-block rows and the work balancing.
    E_extra = 16
    extra_dst = 3 * BLOCK + jax.random.randint(
        k_xd, (E_extra,), 0, BLOCK, dtype=jnp.int32)
    extra_src = jax.random.randint(k_xs, (E_extra,), 0, BLOCK, dtype=jnp.int32)
    extra_norm = jax.random.uniform(k_xn, (E_extra,), dtype=jnp.float32)
    src = jnp.concatenate([src, extra_src])
    dst = jnp.concatenate([dst, extra_dst])
    norm = jnp.concatenate([norm, extra_norm])

    features = jax.random.normal(k_feat, (N, IN_FEATS), dtype=jnp.float32)

    # nn.Linear(in_feats, out_feats) parameters, deterministic uniform init.
    bound = 1.0 / float(IN_FEATS) ** 0.5
    weight = jax.random.uniform(k_w, (OUT_FEATS, IN_FEATS), dtype=jnp.float32,
                                minval=-bound, maxval=bound)
    bias = jax.random.uniform(k_b, (OUT_FEATS,), dtype=jnp.float32,
                              minval=-bound, maxval=bound)
    weight_t = weight.T  # [IN_FEATS, OUT_FEATS]

    # ---- run the Pallas kernel ------------------------------------------------
    out = sparse_gcn_conv(src, dst, norm, features, weight_t, bias,
                          tm=128, tk=128)
    out = jax.block_until_ready(out)

    # ---- pure-JAX f32 reference with the original message-passing semantics ---
    h_neigh = jnp.zeros((N, IN_FEATS), jnp.float32).at[dst].add(
        norm[:, None] * features[src])
    ref = h_neigh @ weight_t + bias[None, :]

    assert out.shape == (N, OUT_FEATS)
    # bf16 A / XW operands with f32 accumulation -> loosened tolerance.
    err = float(jnp.max(jnp.abs(out - ref)))
    assert jnp.allclose(out, ref, atol=5e-2, rtol=5e-2), err

    print("KERNEL_OK")
</pallas_src>

<mosaic_0001>
module attributes {stable_mosaic.version = 11 : i64} {
  func.func @_gcn_block_spmm_kernel(%arg0: i32, %arg1: memref<5xi32, #tpu.memory_space<smem>>, %arg2: memref<5xi32, #tpu.memory_space<smem>>, %arg3: memref<4xi32, #tpu.memory_space<smem>>, %arg4: memref<5x128x128xbf16, #tpu.memory_space<any>>, %arg5: memref<512x128xbf16, #tpu.memory_space<vmem>>, %arg6: memref<128x128xf32, #tpu.memory_space<vmem>>, %arg7: memref<2x128x128xbf16, #tpu.memory_space<vmem>>, %arg8: memref<2x!tpu.dma_semaphore, #tpu.memory_space<semaphore_mem>>) attributes {dimension_semantics = [#tpu.dimension_semantics<parallel>], iteration_bounds = array<i64: 4>, scalar_prefetch = 3 : i64, scratch_operands = 2 : i64, tpu.core_type = #tpu.core_type<tc>, window_params = [{}, {pipeline_mode = #tpu.pipeline_mode<synchronous>, transform_indices = @transform_1, window_bounds = array<i64: 512, 128>}, {transform_indices = @transform_2, window_bounds = array<i64: 128, 128>}]} {
    %0 = arith.index_cast %arg0 : i32 to index
    %1 = memref.load %arg1[%0] : memref<5xi32, #tpu.memory_space<smem>>
    %c1_i32 = arith.constant 1 : i32
    %2 = arith.addi %arg0, %c1_i32 : i32
    %3 = arith.index_cast %2 : i32 to index
    %4 = memref.load %arg1[%3] : memref<5xi32, #tpu.memory_space<smem>>
    %5 = arith.subi %4, %1 : i32
    %cst = arith.constant 0.000000e+00 : f32
    %6 = vector.broadcast %cst : f32 to vector<128x128xf32>
    %c0 = arith.constant 0 : index
    %c0_0 = arith.constant 0 : index
    %7 = vector.load %arg6[%c0, %c0_0] : memref<128x128xf32, #tpu.memory_space<vmem>>, vector<128x128xf32>
    tpu.vector_store %arg6[%c0, %c0_0], %6 {strides = array<i32>} : memref<128x128xf32, #tpu.memory_space<vmem>>, vector<128x128xf32>,
    %c0_i32 = arith.constant 0 : i32
    %8 = arith.cmpi sgt, %5, %c0_i32 : i32
    %9 = arith.extui %8 : i1 to i32
    %c0_i32_1 = arith.constant 0 : i32
    %10 = arith.cmpi ne, %9, %c0_i32_1 : i32
    scf.if %10 {
      %c0_i32_2 = arith.constant 0 : i32
      %c0_i32_3 = arith.constant 0 : i32
      %c0_i32_4 = arith.constant 0 : i32
      %c0_i32_5 = arith.constant 0 : i32
      %11 = tpu.memref_slice %arg4[%1, %c0_i32_4, %c0_i32_5] : memref<5x128x128xbf16, #tpu.memory_space<any>> -> memref<1x128x128xbf16, #tpu.memory_space<any>>
      %12 = tpu.memref_squeeze %11 : memref<1x128x128xbf16, #tpu.memory_space<any>> -> memref<128x128xbf16, #tpu.memory_space<any>>
      %c0_i32_6 = arith.constant 0 : i32
      %c0_i32_7 = arith.constant 0 : i32
      %13 = tpu.memref_slice %arg7[%c0_i32_2, %c0_i32_6, %c0_i32_7] : memref<2x128x128xbf16, #tpu.memory_space<vmem>> -> memref<1x128x128xbf16, #tpu.memory_space<vmem>>
      %14 = tpu.memref_squeeze %13 : memref<1x128x128xbf16, #tpu.memory_space<vmem>> -> memref<128x128xbf16, #tpu.memory_space<vmem>>
      %15 = tpu.memref_slice %arg8[%c0_i32_3] : memref<2x!tpu.dma_semaphore, #tpu.memory_space<semaphore_mem>> -> memref<1x!tpu.dma_semaphore, #tpu.memory_space<semaphore_mem>>
      %16 = tpu.memref_squeeze %15 : memref<1x!tpu.dma_semaphore, #tpu.memory_space<semaphore_mem>> -> memref<!tpu.dma_semaphore, #tpu.memory_space<semaphore_mem>>
      tpu.enqueue_dma source(%12 : memref<128x128xbf16, #tpu.memory_space<any>>) target(%14 : memref<128x128xbf16, #tpu.memory_space<vmem>>) target_semaphore(%16 : memref<!tpu.dma_semaphore, #tpu.memory_space<semaphore_mem>>)
      %c0_i32_8 = arith.constant 0 : i32
      %17 = arith.subi %5, %c0_i32_8 : i32
      %c1_i32_9 = arith.constant 1 : i32
      %c1_i32_10 = arith.constant 1 : i32
      %18 = arith.subi %c1_i32_9, %c1_i32_10 : i32
      %19 = arith.addi %17, %18 : i32
      %c1_i32_11 = arith.constant 1 : i32
      %20 = arith.divsi %19, %c1_i32_11 : i32
      %c1_i32_12 = arith.constant 1 : i32
      %c0_i32_13 = arith.constant 0 : i32
      %c0_i32_14 = arith.constant 0 : i32
      %21 = arith.subi %20, %c0_i32_14 : i32
      %22 = arith.addi %c0_i32_14, %21 : i32
      %c1_i32_15 = arith.constant 1 : i32
      scf.for %arg9 = %c0_i32_14 to %22 step %c1_i32_15  : i32 {
        %23 = arith.muli %arg9, %c1_i32_12 : i32
        %24 = arith.addi %c0_i32_13, %23 : i32
        %c1_i32_16 = arith.constant 1 : i32
        %25 = arith.andi %24, %c1_i32_16 : i32
        %c0_i32_17 = arith.constant 0 : i32
        %c0_i32_18 = arith.constant 0 : i32
        %26 = tpu.memref_slice %arg4[%1, %c0_i32_17, %c0_i32_18] : memref<5x128x128xbf16, #tpu.memory_space<any>> -> memref<1x128x128xbf16, #tpu.memory_space<any>>
        %27 = tpu.memref_squeeze %26 : memref<1x128x128xbf16, #tpu.memory_space<any>> -> memref<128x128xbf16, #tpu.memory_space<any>>
        %c0_i32_19 = arith.constant 0 : i32
        %c0_i32_20 = arith.constant 0 : i32
        %28 = tpu.memref_slice %arg7[%25, %c0_i32_19, %c0_i32_20] : memref<2x128x128xbf16, #tpu.memory_space<vmem>> -> memref<1x128x128xbf16, #tpu.memory_space<vmem>>
        %29 = tpu.memref_squeeze %28 : memref<1x128x128xbf16, #tpu.memory_space<vmem>> -> memref<128x128xbf16, #tpu.memory_space<vmem>>
        %30 = tpu.memref_slice %arg8[%25] : memref<2x!tpu.dma_semaphore, #tpu.memory_space<semaphore_mem>> -> memref<1x!tpu.dma_semaphore, #tpu.memory_space<semaphore_mem>>
        %31 = tpu.memref_squeeze %30 : memref<1x!tpu.dma_semaphore, #tpu.memory_space<semaphore_mem>> -> memref<!tpu.dma_semaphore, #tpu.memory_space<semaphore_mem>>
        tpu.wait_dma2 semaphore(%31 : memref<!tpu.dma_semaphore, #tpu.memory_space<semaphore_mem>>) src(%27 : memref<128x128xbf16, #tpu.memory_space<any>>) dst(%29 : memref<128x128xbf16, #tpu.memory_space<vmem>>)
        %c1_i32_21 = arith.constant 1 : i32
        %32 = arith.addi %24, %c1_i32_21 : i32
        %33 = arith.cmpi slt, %32, %5 : i32
        %34 = arith.extui %33 : i1 to i32
        %c0_i32_22 = arith.constant 0 : i32
        %35 = arith.cmpi ne, %34, %c0_i32_22 : i32
        scf.if %35 {
          %c1_i32_31 = arith.constant 1 : i32
          %50 = arith.subi %c1_i32_31, %25 : i32
          %51 = arith.addi %1, %24 : i32
          %c1_i32_32 = arith.constant 1 : i32
          %52 = arith.addi %51, %c1_i32_32 : i32
          %c0_i32_33 = arith.constant 0 : i32
          %c0_i32_34 = arith.constant 0 : i32
          %53 = tpu.memref_slice %arg4[%52, %c0_i32_33, %c0_i32_34] : memref<5x128x128xbf16, #tpu.memory_space<any>> -> memref<1x128x128xbf16, #tpu.memory_space<any>>
          %54 = tpu.memref_squeeze %53 : memref<1x128x128xbf16, #tpu.memory_space<any>> -> memref<128x128xbf16, #tpu.memory_space<any>>
          %c0_i32_35 = arith.constant 0 : i32
          %c0_i32_36 = arith.constant 0 : i32
          %55 = tpu.memref_slice %arg7[%50, %c0_i32_35, %c0_i32_36] : memref<2x128x128xbf16, #tpu.memory_space<vmem>> -> memref<1x128x128xbf16, #tpu.memory_space<vmem>>
          %56 = tpu.memref_squeeze %55 : memref<1x128x128xbf16, #tpu.memory_space<vmem>> -> memref<128x128xbf16, #tpu.memory_space<vmem>>
          %57 = tpu.memref_slice %arg8[%50] : memref<2x!tpu.dma_semaphore, #tpu.memory_space<semaphore_mem>> -> memref<1x!tpu.dma_semaphore, #tpu.memory_space<semaphore_mem>>
          %58 = tpu.memref_squeeze %57 : memref<1x!tpu.dma_semaphore, #tpu.memory_space<semaphore_mem>> -> memref<!tpu.dma_semaphore, #tpu.memory_space<semaphore_mem>>
          tpu.enqueue_dma source(%54 : memref<128x128xbf16, #tpu.memory_space<any>>) target(%56 : memref<128x128xbf16, #tpu.memory_space<vmem>>) target_semaphore(%58 : memref<!tpu.dma_semaphore, #tpu.memory_space<semaphore_mem>>)
        } else {
        }
        %36 = arith.addi %1, %24 : i32
        %37 = arith.index_cast %36 : i32 to index
        %38 = memref.load %arg2[%37] : memref<5xi32, #tpu.memory_space<smem>>
        %c128_i32 = arith.constant 128 : i32
        %39 = arith.muli %38, %c128_i32 : i32
        %40 = tpu.assume_multiple %39, 128 : i32
        %c0_23 = arith.constant 0 : index
        %c0_24 = arith.constant 0 : index
        %41 = vector.load %arg6[%c0_23, %c0_24] : memref<128x128xf32, #tpu.memory_space<vmem>>, vector<128x128xf32>
        %42 = arith.index_cast %25 : i32 to index
        %c0_25 = arith.constant 0 : index
        %c0_26 = arith.constant 0 : index
        %43 = vector.load %arg7[%42, %c0_25, %c0_26] : memref<2x128x128xbf16, #tpu.memory_space<vmem>>, vector<1x128x128xbf16>
        %44 = vector.shape_cast %43 : vector<1x128x128xbf16> to vector<128x128xbf16>
        %45 = arith.index_cast %40 : i32 to index
        %c0_27 = arith.constant 0 : index
        %46 = vector.load %arg5[%45, %c0_27] : memref<512x128xbf16, #tpu.memory_space<vmem>>, vector<128x128xbf16>
        %cst_28 = arith.constant dense<0.000000e+00> : vector<128x128xf32>
        %47 = tpu.matmul %44, %46, %cst_28 {dimension_numbers = #tpu.dot_dimension_numbers<[1], [0], [0], [1], [0, 0, 1, 1], [], []>} : vector<128x128xbf16>, vector<128x128xbf16>, vector<128x128xf32> -> vector<128x128xf32>
        %48 = arith.addf %41, %47 : vector<128x128xf32>
        %c0_29 = arith.constant 0 : index
        %c0_30 = arith.constant 0 : index
        %49 = vector.load %arg6[%c0_29, %c0_30] : memref<128x128xf32, #tpu.memory_space<vmem>>, vector<128x128xf32>
        tpu.vector_store %arg6[%c0_29, %c0_30], %48 {strides = array<i32>} : memref<128x128xf32, #tpu.memory_space<vmem>>, vector<128x128xf32>,
      }
    } else {
    }
    return
  }
  func.func @transform_1(%arg0: i32, %arg1: memref<5xi32, #tpu.memory_space<smem>>, %arg2: memref<5xi32, #tpu.memory_space<smem>>, %arg3: memref<4xi32, #tpu.memory_space<smem>>) -> (i32, i32) {
    %c0_i32 = arith.constant 0 : i32
    %c0_i32_0 = arith.constant 0 : i32
    %c0_i32_1 = arith.constant 0 : i32
    return %c0_i32, %c0_i32_0 : i32, i32
  }
  func.func @transform_2(%arg0: i32, %arg1: memref<5xi32, #tpu.memory_space<smem>>, %arg2: memref<5xi32, #tpu.memory_space<smem>>, %arg3: memref<4xi32, #tpu.memory_space<smem>>) -> (i32, i32) {
    %0 = arith.index_cast %arg0 : i32 to index
    %1 = memref.load %arg3[%0] : memref<4xi32, #tpu.memory_space<smem>>
    %c0_i32 = arith.constant 0 : i32
    %c0_i32_0 = arith.constant 0 : i32
    return %1, %c0_i32 : i32, i32
  }
}

</mosaic_0001>

<llo_original>
// kernel: tpu_custom_call.1
$region0: #{tpu_custom_call.1}
  #allocation0 [shape = 'u32[]', space=smem, size = 0x4, offset = 0x4, fixed_abs, tag = 'smem constant byte address 0x4 - core index']
  #allocation1 [shape = 'u32[144,128]{1,0:T(1,128)}', space=vmem, size = 0x12000, scoped, tag = 'internal scratch']
  #allocation2 [shape = 'bf16[2,128,128]{2,1,0:T(8,128)(2,1)}', space=vmem, size = 0x10000, scoped, tag = 'scratch operand']
  #allocation3 [shape = 's32[2]{0}', space=sflag, size = 0x8, scoped, tag = 'scratch operand']
  #allocation4 [shape = 's32[1]{0}', space=sflag, size = 0x4, scoped, tag = 'scoped memory for tpu_custom_call.1']
  #allocation5 [shape = 'u8[512]{0}', space=smem, size = 0x200, scoped, tag = 'prefetched SMEM operand 0']
  #allocation6 [shape = 'u8[512]{0}', space=smem, size = 0x200, scoped, tag = 'prefetched SMEM operand 1']
  #allocation7 [shape = 'u8[512]{0}', space=smem, size = 0x200, scoped, tag = 'prefetched SMEM operand 2']
  #allocation12 [shape = 's32[]', space=sflag, size = 0x4, offset = 0, fixed_abs, tag = 'sflag constant byte address 0x0 - dummy sync flag']
  #allocation13 [shape = 's32[]', space=sflag, size = 0x4, offset = 0, fixed_abs, tag = 'sflag constant byte address 0x0 - dummy sync flag']
  #allocation14 [shape = 'u32[]', space=smem, size = 0x4, offset = 0x44, fixed_abs, tag = 'smem constant byte address 0x44 - assertion arg 0']
  #allocation15 [shape = 'u32[]', space=smem, size = 0x4, offset = 0x48, fixed_abs, tag = 'smem constant byte address 0x48 - assertion arg 1']
  #allocation16 [shape = 's32[]', space=sflag, size = 0x4, offset = 0, fixed_abs, tag = 'sflag constant byte address 0x0 - dummy sync flag']
  #allocation17 [shape = 's32[]', space=sflag, size = 0x4, offset = 0, fixed_abs, tag = 'sflag constant byte address 0x0 - dummy sync flag']
  %s0 = inlined_call_operand.hbm [shape: s32[5], index: 0, kind: input, shape index: {}]
  %s1 = inlined_call_operand.vmem [shape: s32[5], index: 1, kind: input, shape index: {}]
  %s2 = inlined_call_operand.vmem [shape: s32[4], index: 2, kind: input, shape index: {}]
  %s3 = inlined_call_operand.hbm [shape: bf16[5,128,128], index: 3, kind: input, shape index: {}]
  %s4 = inlined_call_operand.hbm [shape: bf16[512,128], index: 4, kind: input, shape index: {}]
  %s5 = inlined_call_operand.hbm [shape: f32[512,128], index: 5, kind: output, shape index: {}]
  %s6 = sld [smem:[#allocation0]]
  $region64: #{tpu_custom_call.1} parent=0
    _
  %s8 = ssub.s32 1, %s6
  %s9 = scalar_select 0, %s8, %s6
  %11 = dma.hbm_to_smem %s0, 16, [#allocation5], [#allocation4]
  %s12 = sshll.u32 %s1, 4
  %s13 = int_to_ptr.vmem [resolvable:$true] %s12
  %15 = dma.vmem_to_smem %s13, 16, [#allocation6], [#allocation4]
  %s16 = sshll.u32 %s2, 4
  %s17 = int_to_ptr.vmem [resolvable:$true] %s16
  %19 = dma.vmem_to_smem %s17, 16, [#allocation7], [#allocation4]
  %20 = dma.done [#allocation4], 48
  %21 = sfence
  $region1: #{tpu_custom_call.1} parent=0
    #allocation8 [shape = 'u8[131072]{0}', space=vmem, size = 0x20000, scoped, tag = 'input window, operand 4, single buffered']
    #allocation9 [shape = 's32[2]{0}', space=sflag, size = 0x8, scoped, tag = 'scoped memory for tpu_custom_call.1']
    #allocation10 [shape = 's32[2]{0}', space=sflag, size = 0x8, scoped, tag = 'scoped memory for tpu_custom_call.1']
    #allocation11 [shape = 'u8[131072]{0}', space=vmem, size = 0x20000, scoped, tag = 'output window, operand 0']
    %22 = vsyncpa [#allocation9], 0
    %23 = vsyncpa [#allocation10], 0
    %s24 = scalar_lea.sflag [#allocation10], 1
    %25 = vsyncpa %s24, 0
    loop: start=0, step=1, limit=6
    $region2: #{tpu_custom_call.1} parent=1 // loop_pre_header
      _
    $region3: #{tpu_custom_call.1} parent=1 // loop_header
      %s27 = sphi 0, %s31
      %p28 = scmp.ge.s32.totalorder %s27, 6
      %s35 = sphi 0, %s35
      %s37 = sphi 0, %s35
      %s38 = sphi 0, %s37
      %s52 = sphi 0, %s38
      %s60 = sphi 0, %s62
      %s63 = sphi 0, %s60
      %s64 = sphi 0, %s63
      %s80 = sphi 0, %s64
    $region4: #{tpu_custom_call.1} parent=1 // loop_header_branch
      %30 = sbr.rel (%p28) target = $region8
    $region5: #{tpu_custom_call.1} parent=1 // loop_body
      %s32 = ssub.s32 %s27, 1
      %s33 = ssub.s32 %s27, 2
      %s34 = sadd.s32 %s27, 1
      %s36 = sadd.s32 %s35, 1
      %p39 = scmp.eq.s32.totalorder %s27, 3
      %p40 = scmp.ne.s32.totalorder %s35, %s37
      %p41 = scmp.eq.s32.totalorder %s27, 0
      %p42 = por %p40, %p41
      %p43 = scmp.ne.s32.totalorder %s35, %s37
      %p44 = scmp.eq.s32.totalorder %s32, 3
      %p45 = por %p43, %p44
      %p46 = scmp.ne.s32.totalorder %s37, %s38
      %p47 = scmp.eq.s32.totalorder %s32, 0
      %p48 = por %p46, %p47
      %p49 = scmp.ne.s32.totalorder %s37, %s38
      %p50 = scmp.eq.s32.totalorder %s33, 3
      %p51 = por %p49, %p50
      %p53 = scmp.ne.s32.totalorder %s38, %s52
      %p54 = scmp.eq.s32.totalorder %s33, 0
      %p55 = por %p53, %p54
      %s56 = sld [smem:[#allocation7 + %s27]]
      %s57 = sld [smem:[#allocation7 + %s34]]
      %s58 = ssub.s32 %s56, %s57
      %p59 = scmp.eq.s32.totalorder %s58, 0
      %s61 = sadd.s32 %s60, 1
      %s62 = scalar_select %p59, %s60, %s61
      %p65 = pneg %p59
      %p66 = scmp.eq.s32.totalorder %s27, 3
      %p67 = por %p65, %p66
      %p68 = scmp.ne.s32.totalorder %s60, %s63
      %p69 = scmp.eq.s32.totalorder %s27, 0
      %p70 = por %p68, %p69
      %p71 = scmp.ne.s32.totalorder %s60, %s63
      %p72 = scmp.eq.s32.totalorder %s32, 3
      %p73 = por %p71, %p72
      %p74 = scmp.ne.s32.totalorder %s63, %s64
      %p75 = scmp.eq.s32.totalorder %s32, 0
      %p76 = por %p74, %p75
      %p77 = scmp.ne.s32.totalorder %s63, %s64
      %p78 = scmp.eq.s32.totalorder %s33, 3
      %p79 = por %p77, %p78
      %p81 = scmp.ne.s32.totalorder %s64, %s80
      %p82 = scmp.eq.s32.totalorder %s33, 0
      %p83 = por %p81, %p82
      %p84 = scmp.le.s32.totalorder 1, %s27
      %p85 = scmp.lt.s32.totalorder %s27, 5
      %p86 = pnand %p84, %p85
      %p87 = pneg %p86
      // Predicated region
      $region9: #{tpu_custom_call.1} parent=5 // pred_check
        _
      $region10: #{tpu_custom_call.1} parent=5 // pred_check_branch
        %89 = sbr.rel (%p86) target = $region12
      $region11: #{tpu_custom_call.1} parent=5 // pred_region
        %s90 = ssub.s32 %s27, 1
        // Predicated region
        $region13: #{tpu_custom_call.1} parent=11 // pred_check
          %p91 = pneg %p48
        $region14: #{tpu_custom_call.1} parent=11 // pred_check_branch
          %93 = sbr.rel (%p91) target = $region16
        $region15: #{tpu_custom_call.1} parent=11 // pred_region
          %s95 = ssub.s32 4096, 4096
          %96 = vsyncadd [#allocation9], %s95
          %s97 = sshll.u32 [#allocation8], 4
          %s98 = int_to_ptr.vmem [resolvable:$true] %s97
          %103 = dma.hbm_to_vmem [thread:$0]  %s4, 4096, %s98, [#allocation9], 64, 64, 4
        $region16: #{tpu_custom_call.1} parent=11 // pred_fallthru
          _
      $region12: #{tpu_custom_call.1} parent=5 // pred_fallthru
        _
      %p104 = scmp.lt.s32.totalorder %s27, 4
      // Predicated region
      $region17: #{tpu_custom_call.1} parent=5 // pred_check
        %p105 = pneg %p104
      $region18: #{tpu_custom_call.1} parent=5 // pred_check_branch
        %107 = sbr.rel (%p105) target = $region20
      $region19: #{tpu_custom_call.1} parent=5 // pred_region
        _
      $region20: #{tpu_custom_call.1} parent=5 // pred_fallthru
        _
      %p108 = scmp.le.s32.totalorder 1, %s27
      %p109 = scmp.lt.s32.totalorder %s27, 5
      %p110 = pnand %p108, %p109
      %p111 = pneg %p110
      // Predicated region
      $region21: #{tpu_custom_call.1} parent=5 // pred_check
        _
      $region22: #{tpu_custom_call.1} parent=5 // pred_check_branch
        %113 = sbr.rel (%p110) target = $region24
      $region23: #{tpu_custom_call.1} parent=5 // pred_region
        %s114 = ssub.s32 %s27, 1
        // Predicated region
        $region25: #{tpu_custom_call.1} parent=23 // pred_check
          %p115 = pneg %p48
        $region26: #{tpu_custom_call.1} parent=23 // pred_check_branch
          %117 = sbr.rel (%p115) target = $region28
        $region27: #{tpu_custom_call.1} parent=23 // pred_region
          %118 = dma.done [#allocation9], 4096
        $region28: #{tpu_custom_call.1} parent=23 // pred_fallthru
          _
        %p119 = pneg %p48
        %p120 = pneg %p45
        %p121 = pneg %p76
        %p122 = pneg %p73
        %s123 = sand.u32 %s63, 1
        %s124 = scalar_lea.sflag [#allocation10], %s123
        %s125 = sand.u32 %s63, 1
        %s126 = smul.addr %s125, 128
        %s127 = scalar_lea.vmem [#allocation11], %s126
        %s128 = sld [smem:[#allocation7 + %s32]]
        %s129 = smul.u32 16, %s128
        %s131 = sld [smem:[#allocation5 + %s32]]
        %s132 = sadd.s32 %s32, 1
        %s133 = sld [smem:[#allocation5 + %s132]]
        %s134 = ssub.s32 %s133, %s131
        %135 = vst [vmem:[%s127] sm:$0xff] 0.0
        %136 = vst [vmem:[%s127 + $0x8] sm:$0xff] 0.0
        %137 = vst [vmem:[%s127 + $0x10] sm:$0xff] 0.0
        %138 = vst [vmem:[%s127 + $0x18] sm:$0xff] 0.0
        %139 = vst [vmem:[%s127 + $0x20] sm:$0xff] 0.0
        %140 = vst [vmem:[%s127 + $0x28] sm:$0xff] 0.0
        %141 = vst [vmem:[%s127 + $0x30] sm:$0xff] 0.0
        %142 = vst [vmem:[%s127 + $0x38] sm:$0xff] 0.0
        %143 = vst [vmem:[%s127 + $0x40] sm:$0xff] 0.0
        %144 = vst [vmem:[%s127 + $0x48] sm:$0xff] 0.0
        %145 = vst [vmem:[%s127 + $0x50] sm:$0xff] 0.0
        %146 = vst [vmem:[%s127 + $0x58] sm:$0xff] 0.0
        %147 = vst [vmem:[%s127 + $0x60] sm:$0xff] 0.0
        %148 = vst [vmem:[%s127 + $0x68] sm:$0xff] 0.0
        %149 = vst [vmem:[%s127 + $0x70] sm:$0xff] 0.0
        %150 = vst [vmem:[%s127 + $0x78] sm:$0xff] 0.0
        %p151 = scmp.gt.s32.totalorder %s134, 0
        // Predicated region
        $region29: #{tpu_custom_call.1} parent=23 // pred_check
          %p152 = pneg %p151
        $region30: #{tpu_custom_call.1} parent=23 // pred_check_branch
          %154 = sbr.rel (%p152) target = $region32
        $region31: #{tpu_custom_call.1} parent=23 // pred_region
          %s155 = smul.u32 %s131, 16
          %s156 = smul.addr %s155, 64
          %s157 = scalar_lea.hbm %s3, %s156
          // Predicated region
          $region33: #{tpu_custom_call.1} parent=31 // pred_check
            _
          $region34: #{tpu_custom_call.1} parent=31 // pred_check_branch
            %159 = sbr.rel target = $region36
          $region35: #{tpu_custom_call.1} parent=31 // pred_region
            %160 = sst [smem:[#allocation14]] [#allocation13]
            %161 = sst [smem:[#allocation15]] [#allocation12]
          $region36: #{tpu_custom_call.1} parent=31 // pred_fallthru
            _
          %163 = shalt.err (0)
          %s165 = sshll.u32 [#allocation2], 4
          %s166 = int_to_ptr.vmem [resolvable:$true] %s165
          %168 = dma.hbm_to_vmem [thread:$0]  %s157, 1024, %s166, [#allocation3]
          // While loop
          $region37: #{tpu_custom_call.1} parent=31 // loop_pre_header
            _
          $region38: #{tpu_custom_call.1} parent=31 // loop_header
            %s170 = sphi 0, %s172
            %p171 = scmp.ge.s32.totalorder %s170, %s134
          $region39: #{tpu_custom_call.1} parent=31 // loop_header_branch
            %174 = sbr.rel (%p171) target = $region43
          $region40: #{tpu_custom_call.1} parent=31 // loop_body
            %s175 = sand.u32 %s170, 1
            %s176 = smul.u32 %s175, 16
            %s177 = smul.addr %s176, 4
            %s178 = scalar_lea.vmem [#allocation2], %s177
            %s179 = scalar_lea.sflag [#allocation3], %s175
            %s180 = smul.u32 4, 16
            %s181 = smul.u32 %s180, 1
            %s182 = sshll.u32 %s181, 4
            %183 = dma.done %s179, %s182
            %s184 = sadd.s32 %s170, 1
            %p185 = scmp.lt.s32.totalorder %s184, %s134
            // Predicated region
            $region44: #{tpu_custom_call.1} parent=40 // pred_check
              %p186 = pneg %p185
            $region45: #{tpu_custom_call.1} parent=40 // pred_check_branch
              %188 = sbr.rel (%p186) target = $region47
            $region46: #{tpu_custom_call.1} parent=40 // pred_region
              %s189 = ssub.s32 1, %s175
              %s190 = sadd.s32 %s131, %s170
              %s191 = sadd.s32 %s190, 1
              %s192 = smul.u32 %s191, 16
              %s193 = smul.addr %s192, 64
              %s194 = scalar_lea.hbm %s3, %s193
              %s195 = smul.u32 %s189, 16
              %s196 = smul.addr %s195, 4
              %s197 = scalar_lea.vmem [#allocation2], %s196
              %s198 = scalar_lea.sflag [#allocation3], %s189
              // Predicated region
              $region48: #{tpu_custom_call.1} parent=46 // pred_check
                _
              $region49: #{tpu_custom_call.1} parent=46 // pred_check_branch
                %200 = sbr.rel target = $region51
              $region50: #{tpu_custom_call.1} parent=46 // pred_region
                %201 = sst [smem:[#allocation14]] [#allocation17]
                %202 = sst [smem:[#allocation15]] [#allocation16]
              $region51: #{tpu_custom_call.1} parent=46 // pred_fallthru
                _
              %204 = shalt.err (0)
              %s206 = sshll.u32 %s197, 4
              %s207 = int_to_ptr.vmem [resolvable:$true] %s206
              %209 = dma.hbm_to_vmem [thread:$0]  %s194, 1024, %s207, %s198
            $region47: #{tpu_custom_call.1} parent=40 // pred_fallthru
              _
            %s210 = sadd.s32 %s131, %s170
            %s211 = sld [smem:[#allocation6 + %s210]]
            %s212 = smul.u32 %s211, 128
            %v213 = vld [vmem:[%s127] sm:$0xff]
            %v214 = vld [vmem:[%s127 + $0x8] sm:$0xff]
            %v215 = vld [vmem:[%s127 + $0x10] sm:$0xff]
            %v216 = vld [vmem:[%s127 + $0x18] sm:$0xff]
            %v217 = vld [vmem:[%s127 + $0x20] sm:$0xff]
            %v218 = vld [vmem:[%s127 + $0x28] sm:$0xff]
            %v219 = vld [vmem:[%s127 + $0x30] sm:$0xff]
            %v220 = vld [vmem:[%s127 + $0x38] sm:$0xff]
            %v221 = vld [vmem:[%s127 + $0x40] sm:$0xff]
            %v222 = vld [vmem:[%s127 + $0x48] sm:$0xff]
            %v223 = vld [vmem:[%s127 + $0x50] sm:$0xff]
            %v224 = vld [vmem:[%s127 + $0x58] sm:$0xff]
            %v225 = vld [vmem:[%s127 + $0x60] sm:$0xff]
            %v226 = vld [vmem:[%s127 + $0x68] sm:$0xff]
            %v227 = vld [vmem:[%s127 + $0x70] sm:$0xff]
            %v228 = vld [vmem:[%s127 + $0x78] sm:$0xff]
            %v229 = vld [vmem:[%s178] sm:$0xf]
            %v230 = vld [vmem:[%s178 + $0x4] sm:$0xf]
            %v231 = vld [vmem:[%s178 + $0x8] sm:$0xf]
            %v232 = vld [vmem:[%s178 + $0xc] sm:$0xf]
            %v233 = vld [vmem:[%s178 + $0x10] sm:$0xf]
            %v234 = vld [vmem:[%s178 + $0x14] sm:$0xf]
            %v235 = vld [vmem:[%s178 + $0x18] sm:$0xf]
            %v236 = vld [vmem:[%s178 + $0x1c] sm:$0xf]
            %v237 = vld [vmem:[%s178 + $0x20] sm:$0xf]
            %v238 = vld [vmem:[%s178 + $0x24] sm:$0xf]
            %v239 = vld [vmem:[%s178 + $0x28] sm:$0xf]
            %v240 = vld [vmem:[%s178 + $0x2c] sm:$0xf]
            %v241 = vld [vmem:[%s178 + $0x30] sm:$0xf]
            %v242 = vld [vmem:[%s178 + $0x34] sm:$0xf]
            %v243 = vld [vmem:[%s178 + $0x38] sm:$0xf]
            %v244 = vld [vmem:[%s178 + $0x3c] sm:$0xf]
            %s245 = sshra.s32 %s212, 3
            %s246 = sand.u32 %s212, 7
            %s247 = smul.addr %s245, 4
            %s248 = scalar_lea.vmem [#allocation8], %s247
            %v249 = vld [vmem:[%s248] sm:$0xf]
            %v250 = vld [vmem:[%s248 + $0x4] sm:$0xf]
            %v251 = vld [vmem:[%s248 + $0x8] sm:$0xf]
            %v252 = vld [vmem:[%s248 + $0xc] sm:$0xf]
            %v253 = vld [vmem:[%s248 + $0x10] sm:$0xf]
            %v254 = vld [vmem:[%s248 + $0x14] sm:$0xf]
            %v255 = vld [vmem:[%s248 + $0x18] sm:$0xf]
            %v256 = vld [vmem:[%s248 + $0x1c] sm:$0xf]
            %v257 = vld [vmem:[%s248 + $0x20] sm:$0xf]
            %v258 = vld [vmem:[%s248 + $0x24] sm:$0xf]
            %v259 = vld [vmem:[%s248 + $0x28] sm:$0xf]
            %v260 = vld [vmem:[%s248 + $0x2c] sm:$0xf]
            %v261 = vld [vmem:[%s248 + $0x30] sm:$0xf]
            %v262 = vld [vmem:[%s248 + $0x34] sm:$0xf]
            %v263 = vld [vmem:[%s248 + $0x38] sm:$0xf]
            %v264 = vld [vmem:[%s248 + $0x3c] sm:$0xf]
            %v281 = vunpack.c.l.b16 %v229
            %v282 = vunpack.c.l.b16 %v230
            %v283 = vunpack.c.l.b16 %v231
            %v284 = vunpack.c.l.b16 %v232
            %v285 = vunpack.c.l.b16 %v233
            %v286 = vunpack.c.l.b16 %v234
            %v287 = vunpack.c.l.b16 %v235
            %v288 = vunpack.c.l.b16 %v236
            %v289 = vunpack.c.l.b16 %v237
            %v290 = vunpack.c.l.b16 %v238
            %v291 = vunpack.c.l.b16 %v239
            %v292 = vunpack.c.l.b16 %v240
            %v293 = vunpack.c.l.b16 %v241
            %v294 = vunpack.c.l.b16 %v242
            %v295 = vunpack.c.l.b16 %v243
            %v296 = vunpack.c.l.b16 %v244
            %v297 = vpack.c.b16 %v282, %v281
            %v298 = vpack.c.b16 %v284, %v283
            %v299 = vpack.c.b16 %v286, %v285
            %v300 = vpack.c.b16 %v288, %v287
            %v301 = vpack.c.b16 %v290, %v289
            %v302 = vpack.c.b16 %v292, %v291
            %v303 = vpack.c.b16 %v294, %v293
            %v304 = vpack.c.b16 %v296, %v295
            %v329 = vunpack.c.l.b16 %v249
            %v330 = vunpack.c.l.b16 %v250
            %v331 = vunpack.c.l.b16 %v251
            %v332 = vunpack.c.l.b16 %v252
            %v333 = vunpack.c.l.b16 %v253
            %v334 = vunpack.c.l.b16 %v254
            %v335 = vunpack.c.l.b16 %v255
            %v336 = vunpack.c.l.b16 %v256
            %v337 = vunpack.c.l.b16 %v257
            %v338 = vunpack.c.l.b16 %v258
            %v339 = vunpack.c.l.b16 %v259
            %v340 = vunpack.c.l.b16 %v260
            %v341 = vunpack.c.l.b16 %v261
            %v342 = vunpack.c.l.b16 %v262
            %v343 = vunpack.c.l.b16 %v263
            %v344 = vunpack.c.l.b16 %v264
            %v345 = vpack.c.b16 %v330, %v329
            %v346 = vpack.c.b16 %v332, %v331
            %v347 = vpack.c.b16 %v334, %v333
            %v348 = vpack.c.b16 %v336, %v335
            %v349 = vpack.c.b16 %v338, %v337
            %v350 = vpack.c.b16 %v340, %v339
            %v351 = vpack.c.b16 %v342, %v341
            %v352 = vpack.c.b16 %v344, %v343
            %361 = vmatprep.subr.bf16.mxu0 0
            %362 = vmatpush1.bf16.msra.mxu0 %v352
            %363 = vmatprep.subr.bf16.mxu0 0
            %364 = vmatpush1.bf16.msra.mxu0 %v351
            %365 = vmatprep.subr.bf16.mxu0 0
            %366 = vmatpush1.bf16.msra.mxu0 %v350
            %367 = vmatprep.subr.bf16.mxu0 0
            %368 = vmatpush1.bf16.msra.mxu0 %v349
            %369 = vmatprep.subr.bf16.mxu0 0
            %370 = vmatpush1.bf16.msra.mxu0 %v348
            %371 = vmatprep.subr.bf16.mxu0 0
            %372 = vmatpush1.bf16.msra.mxu0 %v347
            %373 = vmatprep.subr.bf16.mxu0 0
            %374 = vmatpush1.bf16.msra.mxu0 %v346
            %375 = vmatprep.subr.bf16.mxu0 0
            %376 = vmatpush1.bf16.msra.mxu0 %v345
            %377 = vmatprep.subr.bf16.mxu0 0
            %378 = vmatpush2.bf16.msra.mxu0 0
            %379 = vmatprep.subr.bf16.mxu0 0
            %380 = vmatpush2.bf16.msra.mxu0 0
            %381 = vmatprep.subr.bf16.mxu0 0
            %382 = vmatpush2.bf16.msra.mxu0 0
            %383 = vmatprep.subr.bf16.mxu0 0
            %384 = vmatpush2.bf16.msra.mxu0 0
            %385 = vmatprep.subr.bf16.mxu0 0
            %386 = vmatpush2.bf16.msra.mxu0 0
            %387 = vmatprep.subr.bf16.mxu0 0
            %388 = vmatpush2.bf16.msra.mxu0 0
            %389 = vmatprep.subr.bf16.mxu0 0
            %390 = vmatpush2.bf16.msra.mxu0 0
            %391 = vmatprep.subr.bf16.mxu0 0
            %392 = vmatpush2.bf16.msra.mxu0 0
            %393 = vmatprep.mubr.bf16.mxu0 0
            %394 = vmatmul.mubr.bf16.gmra.mxu0 %v297
            %v395 = vpop.f32.mrf.mxu0
            %v396 = vadd.f32 0.0, %v395
            %v397 = vpop.f32.mrf.mxu0
            %v398 = vpop.f32.mrf.mxu0
            %v399 = vadd.f32 0.0, %v398
            %v400 = vpop.f32.mrf.mxu0
            %401 = vmatprep.mubr.bf16.mxu0 0
            %402 = vmatmul.mubr.bf16.gmra.mxu0 %v298
            %v403 = vpop.f32.mrf.mxu0
            %v404 = vadd.f32 0.0, %v403
            %v405 = vpop.f32.mrf.mxu0
            %v406 = vpop.f32.mrf.mxu0
            %v407 = vadd.f32 0.0, %v406
            %v408 = vpop.f32.mrf.mxu0
            %409 = vmatprep.mubr.bf16.mxu0 0
            %410 = vmatmul.mubr.bf16.gmra.mxu0 %v299
            %v411 = vpop.f32.mrf.mxu0
            %v412 = vadd.f32 0.0, %v411
            %v413 = vpop.f32.mrf.mxu0
            %v414 = vpop.f32.mrf.mxu0
            %v415 = vadd.f32 0.0, %v414
            %v416 = vpop.f32.mrf.mxu0
            %417 = vmatprep.mubr.bf16.mxu0 0
            %418 = vmatmul.mubr.bf16.gmra.mxu0 %v300
            %v419 = vpop.f32.mrf.mxu0
            %v420 = vadd.f32 0.0, %v419
            %v421 = vpop.f32.mrf.mxu0
            %v422 = vpop.f32.mrf.mxu0
            %v423 = vadd.f32 0.0, %v422
            %v424 = vpop.f32.mrf.mxu0
            %425 = vmatprep.mubr.bf16.mxu0 0
            %426 = vmatmul.mubr.bf16.gmra.mxu0 %v301
            %v427 = vpop.f32.mrf.mxu0
            %v428 = vadd.f32 0.0, %v427
            %v429 = vpop.f32.mrf.mxu0
            %v430 = vpop.f32.mrf.mxu0
            %v431 = vadd.f32 0.0, %v430
            %v432 = vpop.f32.mrf.mxu0
            %433 = vmatprep.mubr.bf16.mxu0 0
            %434 = vmatmul.mubr.bf16.gmra.mxu0 %v302
            %v435 = vpop.f32.mrf.mxu0
            %v436 = vadd.f32 0.0, %v435
            %v437 = vpop.f32.mrf.mxu0
            %v438 = vpop.f32.mrf.mxu0
            %v439 = vadd.f32 0.0, %v438
            %v440 = vpop.f32.mrf.mxu0
            %441 = vmatprep.mubr.bf16.mxu0 0
            %442 = vmatmul.mubr.bf16.gmra.mxu0 %v303
            %v443 = vpop.f32.mrf.mxu0
            %v444 = vadd.f32 0.0, %v443
            %v445 = vpop.f32.mrf.mxu0
            %v446 = vpop.f32.mrf.mxu0
            %v447 = vadd.f32 0.0, %v446
            %v448 = vpop.f32.mrf.mxu0
            %449 = vmatprep.mubr.bf16.mxu0 0
            %450 = vmatmul.mubr.bf16.gmra.mxu0 %v304
            %v451 = vpop.f32.mrf.mxu0
            %v452 = vadd.f32 0.0, %v451
            %v453 = vpop.f32.mrf.mxu0
            %v454 = vpop.f32.mrf.mxu0
            %v455 = vadd.f32 0.0, %v454
            %v456 = vpop.f32.mrf.mxu0
            %457 = vdwg.mxu0
            %v458 = vadd.f32 %v213, %v396
            %v459 = vadd.f32 %v214, %v399
            %v460 = vadd.f32 %v215, %v404
            %v461 = vadd.f32 %v216, %v407
            %v462 = vadd.f32 %v217, %v412
            %v463 = vadd.f32 %v218, %v415
            %v464 = vadd.f32 %v219, %v420
            %v465 = vadd.f32 %v220, %v423
            %v466 = vadd.f32 %v221, %v428
            %v467 = vadd.f32 %v222, %v431
            %v468 = vadd.f32 %v223, %v436
            %v469 = vadd.f32 %v224, %v439
            %v470 = vadd.f32 %v225, %v444
            %v471 = vadd.f32 %v226, %v447
            %v472 = vadd.f32 %v227, %v452
            %v473 = vadd.f32 %v228, %v455
            %474 = vst [vmem:[%s127] sm:$0xff] %v458
            %475 = vst [vmem:[%s127 + $0x8] sm:$0xff] %v459
            %476 = vst [vmem:[%s127 + $0x10] sm:$0xff] %v460
            %477 = vst [vmem:[%s127 + $0x18] sm:$0xff] %v461
            %478 = vst [vmem:[%s127 + $0x20] sm:$0xff] %v462
            %479 = vst [vmem:[%s127 + $0x28] sm:$0xff] %v463
            %480 = vst [vmem:[%s127 + $0x30] sm:$0xff] %v464
            %481 = vst [vmem:[%s127 + $0x38] sm:$0xff] %v465
            %482 = vst [vmem:[%s127 + $0x40] sm:$0xff] %v466
            %483 = vst [vmem:[%s127 + $0x48] sm:$0xff] %v467
            %484 = vst [vmem:[%s127 + $0x50] sm:$0xff] %v468
            %485 = vst [vmem:[%s127 + $0x58] sm:$0xff] %v469
            %486 = vst [vmem:[%s127 + $0x60] sm:$0xff] %v470
            %487 = vst [vmem:[%s127 + $0x68] sm:$0xff] %v471
            %488 = vst [vmem:[%s127 + $0x70] sm:$0xff] %v472
            %489 = vst [vmem:[%s127 + $0x78] sm:$0xff] %v473
          $region41: #{tpu_custom_call.1} parent=31 // loop_footer
            %s172 = sadd.s32 %s170, 1
          $region42: #{tpu_custom_call.1} parent=31 // loop_footer_branch
            %169 = sbr.rel target = $region38
          $region43: #{tpu_custom_call.1} parent=31 // loop_exit
            _
        $region32: #{tpu_custom_call.1} parent=23 // pred_fallthru
          _
        %s490 = sand.u32 %s63, 1
        %s491 = scalar_lea.sflag [#allocation10], %s490
        %s492 = sand.u32 %s63, 1
        %s493 = smul.addr %s492, 128
        %s494 = scalar_lea.vmem [#allocation11], %s493
        // Predicated region
        $region52: #{tpu_custom_call.1} parent=23 // pred_check
          %p495 = pneg %p73
        $region53: #{tpu_custom_call.1} parent=23 // pred_check_branch
          %497 = sbr.rel (%p495) target = $region55
        $region54: #{tpu_custom_call.1} parent=23 // pred_region
          %s498 = sld [smem:[#allocation7 + %s32]]
          %s499 = smul.u32 16, %s498
          %s501 = ssub.s32 2048, 2048
          %502 = vsyncadd %s491, %s501
          %s503 = smul.addr %s499, 128
          %s504 = scalar_lea.hbm %s5, %s503
          %s505 = sshll.u32 %s494, 4
          %s506 = int_to_ptr.vmem [resolvable:$true] %s505
          %511 = dma.vmem_to_hbm [thread:$0]  %s506, 2048, %s504, %s491, 128, 128, 8
        $region55: #{tpu_custom_call.1} parent=23 // pred_fallthru
          _
      $region24: #{tpu_custom_call.1} parent=5 // pred_fallthru
        _
      %p512 = scmp.le.s32.totalorder 2, %s27
      // Predicated region
      $region56: #{tpu_custom_call.1} parent=5 // pred_check
        %p513 = pneg %p512
      $region57: #{tpu_custom_call.1} parent=5 // pred_check_branch
        %515 = sbr.rel (%p513) target = $region59
      $region58: #{tpu_custom_call.1} parent=5 // pred_region
        %s516 = ssub.s32 %s27, 2
        // Predicated region
        $region60: #{tpu_custom_call.1} parent=58 // pred_check
          %p517 = pneg %p79
        $region61: #{tpu_custom_call.1} parent=58 // pred_check_branch
          %519 = sbr.rel (%p517) target = $region63
        $region62: #{tpu_custom_call.1} parent=58 // pred_region
          %s520 = sand.u32 %s64, 1
          %s521 = scalar_lea.sflag [#allocation10], %s520
          %s522 = sand.u32 %s64, 1
          %s523 = smul.addr %s522, 128
          %s524 = scalar_lea.vmem [#allocation11], %s523
          %525 = dma.done %s521, 2048
        $region63: #{tpu_custom_call.1} parent=58 // pred_fallthru
          _
      $region59: #{tpu_custom_call.1} parent=5 // pred_fallthru
        _
    $region6: #{tpu_custom_call.1} parent=1 // loop_footer
      %s31 = sadd.s32 1, %s27
    $region7: #{tpu_custom_call.1} parent=1 // loop_footer_branch
      %26 = sbr.rel target = $region3
    $region8: #{tpu_custom_call.1} parent=1 // loop_exit
      _
    %526 = vsyncpa [#allocation9], 1
    %s527 = scalar_lea.sflag [#allocation9], 1
    %528 = vsyncpa %s527, 1
    %529 = vsyncpa [#allocation10], 1
    %s530 = scalar_lea.sflag [#allocation10], 1
    %531 = vsyncpa %s530, 1
  %532 = vsyncmov [#allocation3]
  %s533 = vpop.sfrf %532
  %p534 = scmp.eq.s32.totalorder %s533, 0
  %p535 = pneg %p534
  %537 = shalt.err (%p535)
  %s538 = scalar_lea.sflag [#allocation3], 1
  %539 = vsyncmov %s538
  %s540 = vpop.sfrf %539
  %p541 = scmp.eq.s32.totalorder %s540, 0
  %p542 = pneg %p541
  %544 = shalt.err (%p542)

</llo_original>
